<compile_context>
chip_gen: v7x
topology: tpu7x:2x2x1
jax: 0.10.0
libtpu: 0.0.40
codegen_flags: <defaults>
</compile_context>

<pallas_src>
import functools

import jax
import jax.numpy as jnp
from jax.experimental import pallas as pl
from jax.experimental.pallas import tpu as pltpu


def _fused_leaky_relu_kernel(x_ref, b_ref, o_ref, *, negative_slope, scale):
    # Elementwise hot path, entirely on the VPU in VMEM.
    x = x_ref[...].astype(jnp.float32) + b_ref[...].astype(jnp.float32)
    y = x * jnp.where(x >= 0.0,
                      jnp.float32(scale),
                      jnp.float32(scale * negative_slope))
    o_ref[...] = y.astype(o_ref.dtype)


def _round_down(v, m):
    return (v // m) * m


def _choose_col_tile(cols, max_col_tile=2048):
    """Largest 128-multiple divisor of cols <= max_col_tile (lane-dense, unmasked
    stores on every block).  If cols is not a multiple of 128, use the full extent
    (always a legal block; masked stores are then unavoidable for this layout)."""
    if cols % 128 != 0:
        return cols
    cand = _round_down(min(cols, max_col_tile), 128)
    while cols % cand != 0:
        cand -= 128
    return cand


def _choose_row_tile(rows, col_tile, itemsize, target_tile_bytes=4 << 20):
    """Multiple-of-8 row tile targeting ~4 MiB per x tile (~4x that live with
    double-buffered in/out -- well under the VMEM limit), amortizing the ~0.35us
    per-grid-step overhead.  Keeps >=2 row blocks when possible so the v7x
    megacore gets work on both TensorCores."""
    rt = max(8, _round_down(target_tile_bytes // max(1, col_tile * itemsize), 8))
    if rows >= 16:
        rt = min(rt, max(8, _round_down(rows // 2, 8)))
    return rows if rt >= rows else rt


@functools.partial(jax.jit,
                   static_argnames=("negative_slope", "scale", "row_tile", "col_tile"))
def fused_leaky_relu(x, bias, negative_slope=0.2, scale=2 ** 0.5,
                     row_tile=None, col_tile=None):
    """x: (N, C, H, W), bias: (C,). Returns scale * leaky_relu(x + bias[None,:,None,None])."""
    N, C, H, W = x.shape
    rows, cols = N * C, H * W
    x2 = x.reshape(rows, cols)
    # Per-row bias: row r = n*C + c -> bias[c].  Kept in f32 so the bias add happens
    # in f32 even for bf16/fp16 activations (matches PyTorch precision); only N*C
    # floats, so the extra HBM traffic is negligible.
    b2 = jnp.tile(bias.astype(jnp.float32), N).reshape(rows, 1)

    if col_tile is None:
        col_tile = _choose_col_tile(cols)
    if row_tile is None:
        row_tile = _choose_row_tile(rows, col_tile, jnp.dtype(x.dtype).itemsize)

    grid = (pl.cdiv(rows, row_tile), pl.cdiv(cols, col_tile))
    kernel = functools.partial(_fused_leaky_relu_kernel,
                               negative_slope=float(negative_slope),
                               scale=float(scale))

    # NOTE: input_output_aliases={0: 0} would only save HBM capacity (not bandwidth)
    # and would make the op in-place; intentionally left off.
    out2 = pl.pallas_call(
        kernel,
        out_shape=jax.ShapeDtypeStruct((rows, cols), x.dtype),
        grid_spec=pltpu.PrefetchScalarGridSpec(
            num_scalar_prefetch=0,
            grid=grid,
            in_specs=[
                pl.BlockSpec((row_tile, col_tile), lambda i, j: (i, j)),
                pl.BlockSpec((row_tile, 1), lambda i, j: (i, 0)),
            ],
            out_specs=pl.BlockSpec((row_tile, col_tile), lambda i, j: (i, j)),
        ),
        compiler_params=pltpu.CompilerParams(
            dimension_semantics=("parallel", "parallel"),
            vmem_limit_bytes=64 * 1024 * 1024,
        ),
    )(x2, b2)

    return out2.reshape(N, C, H, W)


class FusedLeakyReLU:
    """FusedLeakyReLU = scale * LeakyReLU(x + bias); bias is a learned per-channel param."""

    def __init__(self, channel, negative_slope=0.2, scale=2 ** 0.5):
        # deterministic init matching nn.Parameter(torch.zeros(channel))
        self.bias = jnp.zeros((channel,), dtype=jnp.float32)
        self.negative_slope = negative_slope
        self.scale = scale

    def __call__(self, x):
        return fused_leaky_relu(x, self.bias, self.negative_slope, self.scale)


if __name__ == "__main__":
    key = jax.random.PRNGKey(0)
    N, C, H, W = 2, 4, 16, 16
    kx, kb = jax.random.split(key)
    x = jax.random.normal(kx, (N, C, H, W), dtype=jnp.float32)

    mod = FusedLeakyReLU(C)
    # nonzero deterministic bias so the broadcast path is exercised
    mod.bias = jax.random.normal(kb, (C,), dtype=jnp.float32)

    out = mod(x)
    jax.block_until_ready(out)

    ref = mod.scale * jax.nn.leaky_relu(
        x + mod.bias.reshape(1, C, 1, 1), negative_slope=mod.negative_slope)
    assert out.shape == (N, C, H, W)
    assert jnp.allclose(out, ref, atol=1e-5, rtol=1e-5)

    # Extra check: multi-block grid path (rows tiled, lane-dense 128-multiple cols).
    xb = jax.random.normal(jax.random.PRNGKey(1), (2, 8, 32, 32), dtype=jnp.float32)
    bb = jax.random.normal(jax.random.PRNGKey(2), (8,), dtype=jnp.float32)
    outb = fused_leaky_relu(xb, bb)
    refb = (2 ** 0.5) * jax.nn.leaky_relu(xb + bb.reshape(1, 8, 1, 1), negative_slope=0.2)
    jax.block_until_ready(outb)
    assert jnp.allclose(outb, refb, atol=1e-5, rtol=1e-5)

    # Extra check: cols not a multiple of 128 (full-width fallback block).
    xc = jax.random.normal(jax.random.PRNGKey(3), (2, 4, 10, 10), dtype=jnp.float32)
    bc = jax.random.normal(jax.random.PRNGKey(4), (4,), dtype=jnp.float32)
    outc = fused_leaky_relu(xc, bc)
    refc = (2 ** 0.5) * jax.nn.leaky_relu(xc + bc.reshape(1, 4, 1, 1), negative_slope=0.2)
    jax.block_until_ready(outc)
    assert jnp.allclose(outc, refc, atol=1e-5, rtol=1e-5)

    print("KERNEL_OK")
</pallas_src>

<mosaic_0001>
module attributes {stable_mosaic.version = 11 : i64} {
  func.func @_fused_leaky_relu_kernel(%arg0: i32, %arg1: i32, %arg2: memref<8x256xf32, #tpu.memory_space<vmem>>, %arg3: memref<8x1xf32, #tpu.memory_space<vmem>>, %arg4: memref<8x256xf32, #tpu.memory_space<vmem>>) attributes {dimension_semantics = [#tpu.dimension_semantics<parallel>, #tpu.dimension_semantics<parallel>], iteration_bounds = array<i64: 1, 1>, scalar_prefetch = 0 : i64, scratch_operands = 0 : i64, tpu.core_type = #tpu.core_type<tc>, window_params = [{transform_indices = @transform_0, window_bounds = array<i64: 8, 256>}, {transform_indices = @transform_1, window_bounds = array<i64: 8, 1>}, {transform_indices = @transform_2, window_bounds = array<i64: 8, 256>}]} {
    %c0 = arith.constant 0 : index
    %c0_0 = arith.constant 0 : index
    %0 = vector.load %arg2[%c0, %c0_0] : memref<8x256xf32, #tpu.memory_space<vmem>>, vector<8x256xf32>
    %c0_1 = arith.constant 0 : index
    %c0_2 = arith.constant 0 : index
    %1 = vector.load %arg3[%c0_1, %c0_2] : memref<8x1xf32, #tpu.memory_space<vmem>>, vector<8x1xf32>
    %2 = vector.broadcast %1 : vector<8x1xf32> to vector<8x256xf32>
    %3 = arith.addf %0, %2 : vector<8x256xf32>
    %cst = arith.constant 0.000000e+00 : f32
    %4 = vector.broadcast %cst : f32 to vector<8x256xf32>
    %5 = arith.cmpf oge, %3, %4 : vector<8x256xf32>
    %cst_3 = arith.constant 1.41421354 : f32
    %cst_4 = arith.constant 0.282842726 : f32
    %6 = vector.broadcast %cst_3 : f32 to vector<8x256xf32>
    %7 = vector.broadcast %cst_4 : f32 to vector<8x256xf32>
    %8 = arith.select %5, %6, %7 : vector<8x256xi1>, vector<8x256xf32>
    %9 = arith.mulf %3, %8 : vector<8x256xf32>
    %c0_5 = arith.constant 0 : index
    %c0_6 = arith.constant 0 : index
    %10 = vector.load %arg4[%c0_5, %c0_6] : memref<8x256xf32, #tpu.memory_space<vmem>>, vector<8x256xf32>
    tpu.vector_store %arg4[%c0_5, %c0_6], %9 {strides = array<i32>} : memref<8x256xf32, #tpu.memory_space<vmem>>, vector<8x256xf32>,
    return
  }
  func.func @transform_0(%arg0: i32, %arg1: i32) -> (i32, i32) {
    %c0_i32 = arith.constant 0 : i32
    return %arg0, %arg1 : i32, i32
  }
  func.func @transform_1(%arg0: i32, %arg1: i32) -> (i32, i32) {
    %c0_i32 = arith.constant 0 : i32
    %c0_i32_0 = arith.constant 0 : i32
    return %arg0, %c0_i32 : i32, i32
  }
  func.func @transform_2(%arg0: i32, %arg1: i32) -> (i32, i32) {
    %c0_i32 = arith.constant 0 : i32
    return %arg0, %arg1 : i32, i32
  }
}

</mosaic_0001>

<llo_original>
// kernel: tile.8
$region0: #{tile.8}
  #allocation0 [shape = 's32[1]{0}', space=sflag, size = 0x4, scoped, tag = 'scoped memory for tile.8']
  %s0 = inlined_call_operand.vmem [shape: f32[4], index: 0, kind: input, shape index: {}]
  %s1 = inlined_call_operand.vmem [shape: f32[2,4], index: 1, kind: output, shape index: {}]
  // Predicated region
  $region2: #{tile.8} parent=0 // pred_check
    _
  $region3: #{tile.8} parent=0 // pred_check_branch
    %3 = sbr.rel (0) target = $region5
  $region4: #{tile.8} parent=0 // pred_region
    _
  $region5: #{tile.8} parent=0 // pred_fallthru
    _
  %v4 = vld [vmem:[%s0] ss:$0 sm:$0xff]
  %5 = vst [vmem:[%s1] sm:$0x3] %v4

// kernel: tile.0
$region0: #{tile.0}
  %s0 = inlined_call_operand.vmem [shape: f32[2,4], index: 0, kind: input, shape index: {}]
  %s1 = inlined_call_operand.hbm [shape: f32[8,1], index: 1, kind: output, shape index: {}]
  $region1: #{tile.0} parent=0
    #allocation0 [shape = 'u8[4096]{0}', space=vmem, size = 0x1000, scoped, tag = 'operand span for operand 1']
    #allocation1 [shape = 's32[1]{0}', space=sflag, size = 0x4, scoped, tag = 'scoped memory for tile.0']
    #allocation2 [shape = 'u8[4096]{0}', space=vmem, size = 0x1000, scoped, tag = 'scoped mem for input reshape']
    %2 = vsyncpa [#allocation1], 0
    %s4 = sshllo.u32 0, 2
    %v5 = vld [vmem:[%s0] sm:%s4]
    %6 = vst [vmem:[#allocation2] sm:%s4] %v5
    %v7 = vld [vmem:[#allocation2] sm:$0x3]
    %vm8 = vcmask 7168
    %9 = vst.msk [vmem:[#allocation0] ss:$4 sm:$0x3] %vm8, %v7
    %v10 = vld [vmem:[#allocation2] sm:$0x3]
    %11 = vrot.lane.b32.xlu0 %v10, 127
    %v12 = vpop.permute.xlu0 %11
    %vm13 = vcmask 7168
    %s14 = scalar_lea.vmem [#allocation0], 1
    %15 = vst.msk [vmem:[%s14] ss:$4 sm:$0x3] %vm13, %v12
    %v16 = vld [vmem:[#allocation2] sm:$0x3]
    %17 = vrot.lane.b32.xlu0 %v16, 126
    %v18 = vpop.permute.xlu0 %17
    %vm19 = vcmask 7168
    %s20 = scalar_lea.vmem [#allocation0], 2
    %21 = vst.msk [vmem:[%s20] ss:$4 sm:$0x3] %vm19, %v18
    %v22 = vld [vmem:[#allocation2] sm:$0x3]
    %23 = vrot.lane.b32.xlu0 %v22, 125
    %v24 = vpop.permute.xlu0 %23
    %vm25 = vcmask 7168
    %s26 = scalar_lea.vmem [#allocation0], 3
    %27 = vst.msk [vmem:[%s26] ss:$4 sm:$0x3] %vm25, %v24
    %s29 = ssub.s32 128, 128
    %30 = vsyncadd [#allocation1], %s29
    %s32 = sshll.u32 [#allocation0], 4
    %s33 = int_to_ptr.vmem [resolvable:$true] %s32
    %35 = dma.vmem_to_hbm [thread:$0]  %s33, 128, %s1, [#allocation1]
    %36 = dma.done [#allocation1], 128
    %37 = vsyncpa [#allocation1], 1

// kernel: fused_leaky_relu.1
$region0: #{fused_leaky_relu.1}
  #allocation0 [shape = 'u32[]', space=smem, size = 0x4, offset = 0x4, fixed_abs, tag = 'smem constant byte address 0x4 - core index']
  #allocation1 [shape = 'u32[144,128]{1,0:T(1,128)}', space=vmem, size = 0x12000, scoped, tag = 'internal scratch']
  %s0 = inlined_call_operand.hbm [shape: f32[8,256], index: 0, kind: input, shape index: {}]
  %s1 = inlined_call_operand.hbm [shape: f32[8,1], index: 1, kind: input, shape index: {}]
  %s2 = inlined_call_operand.hbm [shape: f32[8,256], index: 2, kind: output, shape index: {}]
  %s3 = sld [smem:[#allocation0]]
  $region26: #{fused_leaky_relu.1} parent=0
    _
  %s5 = ssub.s32 1, %s3
  %s6 = scalar_select 0, %s5, %s3
  $region1: #{fused_leaky_relu.1} parent=0
    #allocation2 [shape = 'u8[8192]{0}', space=vmem, size = 0x2000, scoped, tag = 'input window, operand 0, single buffered']
    #allocation3 [shape = 's32[1]{0}', space=sflag, size = 0x4, scoped, tag = 'scoped memory for fused_leaky_relu.1']
    #allocation4 [shape = 's32[1]{0}', space=sflag, size = 0x4, scoped, tag = 'scoped memory for fused_leaky_relu.1']
    #allocation5 [shape = 'u8[4096]{0}', space=vmem, size = 0x1000, scoped, tag = 'input window, operand 1, single buffered']
    #allocation6 [shape = 's32[1]{0}', space=sflag, size = 0x4, scoped, tag = 'scoped memory for fused_leaky_relu.1']
    #allocation7 [shape = 'u8[8192]{0}', space=vmem, size = 0x2000, scoped, tag = 'output window, operand 0, single buffered']
    %7 = vsyncpa [#allocation3], 0
    %8 = vsyncpa [#allocation6], 0
    %9 = vsyncpa [#allocation4], 0
    // Predicated region
    $region2: #{fused_leaky_relu.1} parent=1 // pred_check
      _
    $region3: #{fused_leaky_relu.1} parent=1 // pred_check_branch
      %11 = sbr.rel (0) target = $region5
    $region4: #{fused_leaky_relu.1} parent=1 // pred_region
      %s13 = ssub.s32 256, 256
      %14 = vsyncadd [#allocation3], %s13
      %s16 = sshll.u32 [#allocation2], 4
      %s17 = int_to_ptr.vmem [resolvable:$true] %s16
      %19 = dma.hbm_to_vmem [thread:$0]  %s0, 256, %s17, [#allocation3]
    $region5: #{fused_leaky_relu.1} parent=1 // pred_fallthru
      _
    // Predicated region
    $region6: #{fused_leaky_relu.1} parent=1 // pred_check
      _
    $region7: #{fused_leaky_relu.1} parent=1 // pred_check_branch
      %21 = sbr.rel (0) target = $region9
    $region8: #{fused_leaky_relu.1} parent=1 // pred_region
      %s23 = ssub.s32 128, 128
      %24 = vsyncadd [#allocation6], %s23
      %s26 = sshll.u32 [#allocation5], 4
      %s27 = int_to_ptr.vmem [resolvable:$true] %s26
      %29 = dma.hbm_to_vmem [thread:$0]  %s1, 128, %s27, [#allocation6]
    $region9: #{fused_leaky_relu.1} parent=1 // pred_fallthru
      _
    // Predicated region
    $region10: #{fused_leaky_relu.1} parent=1 // pred_check
      _
    $region11: #{fused_leaky_relu.1} parent=1 // pred_check_branch
      %31 = sbr.rel (0) target = $region13
    $region12: #{fused_leaky_relu.1} parent=1 // pred_region
      %32 = dma.done [#allocation3], 256
    $region13: #{fused_leaky_relu.1} parent=1 // pred_fallthru
      _
    // Predicated region
    $region14: #{fused_leaky_relu.1} parent=1 // pred_check
      _
    $region15: #{fused_leaky_relu.1} parent=1 // pred_check_branch
      %34 = sbr.rel (0) target = $region17
    $region16: #{fused_leaky_relu.1} parent=1 // pred_region
      %35 = dma.done [#allocation6], 128
    $region17: #{fused_leaky_relu.1} parent=1 // pred_fallthru
      _
    %v36 = vld [vmem:[#allocation2] sm:$0xff]
    %v37 = vld [vmem:[#allocation2 + $0x8] sm:$0xff]
    %v38 = vld [vmem:[#allocation5] sm:$0xff]
    %40 = vset.pattern.permute.xlu0 0
    %41 = vperm.xlu0 %40, %v38
    %v42 = vpop.permute.xlu0 %41
    %v44 = vadd.f32 %v36, %v42
    %v45 = vadd.f32 %v37, %v42
    %vm46 = vcmp.ge.f32.partialorder %v44, 0.0
    %vm47 = vcmp.ge.f32.partialorder %v45, 0.0
    %v48 = vsel %vm46, 1.4142135, 0.28284273
    %v49 = vsel %vm47, 1.4142135, 0.28284273
    %v50 = vmul.f32 %v44, %v48
    %v51 = vmul.f32 %v45, %v49
    %52 = vst [vmem:[#allocation7] sm:$0xff] %v50
    %53 = vst [vmem:[#allocation7 + $0x8] sm:$0xff] %v51
    // Predicated region
    $region18: #{fused_leaky_relu.1} parent=1 // pred_check
      _
    $region19: #{fused_leaky_relu.1} parent=1 // pred_check_branch
      %55 = sbr.rel (0) target = $region21
    $region20: #{fused_leaky_relu.1} parent=1 // pred_region
      %s57 = ssub.s32 256, 256
      %58 = vsyncadd [#allocation4], %s57
      %s60 = sshll.u32 [#allocation7], 4
      %s61 = int_to_ptr.vmem [resolvable:$true] %s60
      %63 = dma.vmem_to_hbm [thread:$0]  %s61, 256, %s2, [#allocation4]
    $region21: #{fused_leaky_relu.1} parent=1 // pred_fallthru
      _
    // Predicated region
    $region22: #{fused_leaky_relu.1} parent=1 // pred_check
      _
    $region23: #{fused_leaky_relu.1} parent=1 // pred_check_branch
      %65 = sbr.rel (0) target = $region25
    $region24: #{fused_leaky_relu.1} parent=1 // pred_region
      %66 = dma.done [#allocation4], 256
    $region25: #{fused_leaky_relu.1} parent=1 // pred_fallthru
      _
    %67 = vsyncpa [#allocation3], 1
    %68 = vsyncpa [#allocation6], 1
    %69 = vsyncpa [#allocation4], 1

</llo_original>
